<compile_context>
chip_gen: v7x
topology: tpu7x:2x2x1
jax: 0.10.0
libtpu: 0.0.40
codegen_flags: <defaults>
</compile_context>

<pallas_src>
import functools

import jax
import jax.numpy as jnp
from jax import lax
from jax.experimental import pallas as pl
from jax.experimental.pallas import tpu as pltpu


# ---------------------------------------------------------------------------
# Shared math helpers (run inside kernels)
# ---------------------------------------------------------------------------
def _channel_totals(ssq, reps):
    """ssq: (..., 1, L) per-lane sums where lane l holds channel l % (L//reps).
    Returns per-channel totals replicated across all L lanes via a log2(reps)
    doubling tree of circular lane rolls (XLU slot).  reps is a power of two."""
    if reps <= 1:
        return ssq
    L = ssq.shape[-1]
    shift = L // reps
    total = ssq
    r = reps
    while r > 1:
        total = total + pltpu.roll(total, shift=shift, axis=ssq.ndim - 1)
        shift *= 2
        r //= 2
    return total


def _mult_from_ssq(ssq, gamma_f32, reps):
    """(nb, 1, L) sum-of-squares -> (nb, 1, L) multiplier 1 + gamma * Nx (f32)."""
    L = ssq.shape[-1]
    total = _channel_totals(ssq, reps)
    gx = jnp.sqrt(total)                       # per-channel L2 norm, lane-tiled
    # Every channel appears L/C times across lanes, so the lane mean equals the
    # channel mean in both the folded (L=128) and generic (L=C) layouts.
    mean = jnp.sum(gx, axis=2, keepdims=True) * (1.0 / L)
    nx = gx / (mean + 1e-6)                    # tiny (nb,1,L) op: exact divide
    return 1.0 + gamma_f32 * nx


# ---------------------------------------------------------------------------
# Path 1: fused single pass (one HBM read + one write per element)
# ---------------------------------------------------------------------------
def grn_fused_kernel(x_ref, gamma_ref, beta_ref, o_ref, *, reps, chunk):
    nb, rows, L = x_ref.shape
    n_full = rows // chunk
    rem = rows - n_full * chunk

    def row_start(i):
        s = i * chunk
        return pl.multiple_of(s, 8) if chunk % 8 == 0 else s

    def ssq_of(start, size):
        xc = x_ref[:, pl.ds(start, size), :].astype(jnp.float32)
        return jnp.sum(xc * xc, axis=1, keepdims=True)

    # Sum of squares over rows, chunked so only a ~512 KiB f32 temp is live.
    acc = jnp.zeros((nb, 1, L), jnp.float32)
    if n_full > 0:
        acc = lax.fori_loop(0, n_full,
                            lambda i, a: a + ssq_of(row_start(i), chunk),
                            acc, unroll=(n_full <= 4))
    if rem > 0:
        acc = acc + ssq_of(n_full * chunk, rem)

    mult = _mult_from_ssq(acc, gamma_ref[...].astype(jnp.float32), reps)
    beta = beta_ref[...].astype(jnp.float32)

    def apply_at(start, size):
        xc = x_ref[:, pl.ds(start, size), :].astype(jnp.float32)
        o_ref[:, pl.ds(start, size), :] = (xc * mult + beta).astype(o_ref.dtype)

    if n_full > 0:
        def apply_body(i, carry):
            apply_at(row_start(i), chunk)
            return carry
        lax.fori_loop(0, n_full, apply_body, 0, unroll=(n_full <= 4))
    if rem > 0:
        apply_at(n_full * chunk, rem)


# ---------------------------------------------------------------------------
# Path 2: two-pass reduce (ssq over bounded row tiles) then apply
# ---------------------------------------------------------------------------
def grn_reduce_kernel(x_ref, gamma_ref, mult_ref, acc_ref, *, reps, rows_total):
    t = pl.program_id(1)
    rt = x_ref.shape[1]

    @pl.when(t == 0)
    def _init():
        acc_ref[...] = jnp.zeros_like(acc_ref)

    x = x_ref[...].astype(jnp.float32)                       # (1, rt, L)
    if rows_total % rt != 0:
        # Ragged last tile: zero rows past the array end (their contents come
        # from an unspecified padded read).
        valid = rows_total - t * rt
        row_ids = lax.broadcasted_iota(jnp.int32, x.shape, 1)
        x = jnp.where(row_ids < valid, x, 0.0)
    acc_ref[...] += jnp.sum(x * x, axis=1, keepdims=True)

    @pl.when(t == pl.num_programs(1) - 1)
    def _finalize():
        mult_ref[...] = _mult_from_ssq(
            acc_ref[...], gamma_ref[...].astype(jnp.float32), reps)


def grn_apply_kernel(x_ref, mult_ref, beta_ref, o_ref):
    x = x_ref[...].astype(jnp.float32)                       # (1, rt, L)
    o_ref[...] = (x * mult_ref[...]
                  + beta_ref[...].astype(jnp.float32)).astype(o_ref.dtype)
    # Out-of-bounds rows of a ragged last tile are dropped at writeback.


# ---------------------------------------------------------------------------
# Wrapper helpers
# ---------------------------------------------------------------------------
def _tpu_vmem_capacity_bytes():
    try:
        info = pltpu.get_tpu_info()
        cap = getattr(info, "vmem_capacity_bytes", None)
        if cap:
            return int(cap)
    except Exception:
        pass
    return 64 * 1024 * 1024       # conservative: assume v7x-class 64 MiB VMEM


def _round_down_mult(x, m):
    return max(m, (x // m) * m)


def _pick_nb(n, per_batch_bytes, target_block_bytes=1 << 20, min_steps=8):
    """Pack batch elements per grid step only for tiny blocks, keeping >=
    min_steps grid steps for DMA/compute overlap and megacore sharding."""
    if n < 2 * min_steps or per_batch_bytes >= target_block_bytes:
        return 1
    cap = min(n // min_steps, max(1, target_block_bytes // per_batch_bytes))
    for cand in range(int(cap), 0, -1):
        if n % cand == 0:
            return cand
    return 1


def _pick_row_tile(rows, lanes, target_bytes):
    """Rows per two-pass tile: multiple of 8, sized so the f32 working block is
    ~target_bytes, never unbounded.  Prefers an exact divisor of `rows` (so no
    ragged tile) when one is reasonably close; otherwise a cdiv grid is used."""
    rt = _round_down_mult(max(1, target_bytes // (lanes * 4)), 8)
    if rt >= rows:
        return rows
    lo = max(8, _round_down_mult(max(rt // 2, 8), 8))
    for cand in range(rt, lo - 1, -8):
        if rows % cand == 0:
            return cand
    return rt


# ---------------------------------------------------------------------------
# Public wrapper
# ---------------------------------------------------------------------------
def grn_pallas(x, gamma, beta, *, single_pass_budget_bytes=None,
               two_pass_tile_bytes=None):
    """GRN forward. x: (N, H, W, C) channels-last; gamma/beta: (1, 1, 1, C)."""
    N, H, W, C = x.shape
    HW = H * W
    itemsize = x.dtype.itemsize

    # Generation-aware budgets (v5e/v6e: 128 MiB VMEM; v7x-class: 64 MiB).
    big_vmem = _tpu_vmem_capacity_bytes() >= 96 * 1024 * 1024
    if single_pass_budget_bytes is None:
        single_pass_budget_bytes = (12 << 20) if big_vmem else (5 << 20)
    if two_pass_tile_bytes is None:
        two_pass_tile_bytes = (3 << 20) if big_vmem else (3 << 19)
    vmem_limit = (96 << 20) if big_vmem else (40 << 20)

    def cparams(sem):
        return pltpu.CompilerParams(dimension_semantics=sem,
                                    vmem_limit_bytes=vmem_limit)

    g = gamma.reshape(C).astype(jnp.float32)
    b = beta.reshape(C).astype(jnp.float32)

    # ---- lane-dense view ----------------------------------------------------
    if C < 128 and 128 % C == 0 and HW % (128 // C) == 0:
        # Fold HW*C into 128-wide lanes so every store is unmasked.
        reps = 128 // C
        L = 128
        rows = (HW * C) // 128
        g_lane = jnp.tile(g, reps).reshape(1, 1, L)
        b_lane = jnp.tile(b, reps).reshape(1, 1, L)
    else:
        # Channels on the lane axis.  Lane-dense for the common ConvNeXt widths
        # (C % 128 == 0); other C accept masked tail stores but stay tiled.
        reps = 1
        L = C
        rows = HW
        g_lane = g.reshape(1, 1, L)
        b_lane = b.reshape(1, 1, L)
    xv = x.reshape(N, rows, L)                  # layout-preserving (free)

    per_batch_bytes = rows * L * itemsize

    if per_batch_bytes <= single_pass_budget_bytes:
        # ---- Path 1: fused single pass -------------------------------------
        nb = _pick_nb(N, per_batch_bytes)
        chunk = min(rows, _round_down_mult(
            max(1, (512 << 10) // (nb * L * 4)), 8))
        out = pl.pallas_call(
            functools.partial(grn_fused_kernel, reps=reps, chunk=chunk),
            out_shape=jax.ShapeDtypeStruct((N, rows, L), x.dtype),
            grid_spec=pltpu.PrefetchScalarGridSpec(
                num_scalar_prefetch=0,
                grid=(N // nb,),
                in_specs=[
                    pl.BlockSpec((nb, rows, L), lambda i: (i, 0, 0)),
                    pl.BlockSpec((1, 1, L), lambda i: (0, 0, 0)),
                    pl.BlockSpec((1, 1, L), lambda i: (0, 0, 0)),
                ],
                out_specs=pl.BlockSpec((nb, rows, L), lambda i: (i, 0, 0)),
            ),
            compiler_params=cparams(("parallel",)),
        )(xv, g_lane, b_lane)
        return out.reshape(N, H, W, C)

    # ---- Path 2: two-pass reduce / apply with bounded row tiles -------------
    rt = _pick_row_tile(rows, L, two_pass_tile_bytes)
    T = pl.cdiv(rows, rt)

    # TODO(synk): for N == 1 on v7x, split the row axis into a small leading
    # "parallel" axis so the second TensorCore contributes to the reduce pass.
    mult = pl.pallas_call(
        functools.partial(grn_reduce_kernel, reps=reps, rows_total=rows),
        out_shape=jax.ShapeDtypeStruct((N, 1, L), jnp.float32),
        grid_spec=pltpu.PrefetchScalarGridSpec(
            num_scalar_prefetch=0,
            grid=(N, T),
            in_specs=[
                pl.BlockSpec((1, rt, L), lambda bb, t: (bb, t, 0)),
                pl.BlockSpec((1, 1, L), lambda bb, t: (0, 0, 0)),
            ],
            out_specs=pl.BlockSpec((1, 1, L), lambda bb, t: (bb, 0, 0)),
            scratch_shapes=[pltpu.VMEM((1, 1, L), jnp.float32)],
        ),
        compiler_params=cparams(("parallel", "arbitrary")),
    )(xv, g_lane)

    out = pl.pallas_call(
        grn_apply_kernel,
        out_shape=jax.ShapeDtypeStruct((N, rows, L), x.dtype),
        grid_spec=pltpu.PrefetchScalarGridSpec(
            num_scalar_prefetch=0,
            grid=(N, T),
            in_specs=[
                pl.BlockSpec((1, rt, L), lambda bb, t: (bb, t, 0)),
                pl.BlockSpec((1, 1, L), lambda bb, t: (bb, 0, 0)),
                pl.BlockSpec((1, 1, L), lambda bb, t: (0, 0, 0)),
            ],
            out_specs=pl.BlockSpec((1, rt, L), lambda bb, t: (bb, t, 0)),
        ),
        compiler_params=cparams(("parallel", "parallel")),
    )(xv, mult, b_lane)
    return out.reshape(N, H, W, C)


def grn_reference(x, gamma, beta):
    """Plain-JAX reference matching the PyTorch forward exactly."""
    gx = jnp.sqrt(jnp.sum(x.astype(jnp.float32) ** 2, axis=(1, 2), keepdims=True))
    nx = gx / (jnp.mean(gx, axis=-1, keepdims=True) + 1e-6)
    return gamma * (x * nx) + beta + x


if __name__ == "__main__":
    key = jax.random.PRNGKey(0)
    k_x, k_g, k_b = jax.random.split(key, 3)
    TOL = dict(atol=1e-3, rtol=1e-3)

    def check(name, x, gamma, beta, **kw):
        got = jax.block_until_ready(grn_pallas(x, gamma, beta, **kw))
        want = grn_reference(x, gamma, beta)
        assert got.shape == x.shape, name
        assert jnp.allclose(got, want, **TOL), f"{name}: mismatch vs reference"

    # 1) C divides 128 (lane-folded), fused single-pass path.
    N, H, W, C = 2, 16, 16, 32
    x = jax.random.normal(k_x, (N, H, W, C), dtype=jnp.float32)
    gamma = 0.1 * jax.random.normal(k_g, (1, 1, 1, C), dtype=jnp.float32)
    beta = 0.1 * jax.random.normal(k_b, (1, 1, 1, C), dtype=jnp.float32)
    check("fused/lane-folded", x, gamma, beta)

    # 2) Same inputs forced through the two-pass reduce/apply path.
    check("two-pass/lane-folded", x, gamma, beta, single_pass_budget_bytes=0)

    # 3) C a multiple of 128 (ConvNeXt-style width), generic lane-dense path.
    C2 = 128
    x2 = jax.random.normal(k_x, (2, 8, 8, C2), dtype=jnp.float32)
    g2 = 0.1 * jax.random.normal(k_g, (1, 1, 1, C2), dtype=jnp.float32)
    b2 = 0.1 * jax.random.normal(k_b, (1, 1, 1, C2), dtype=jnp.float32)
    check("fused/C=128", x2, g2, b2)

    # 4) Two-pass with a ragged last row tile (rows=25, rt=8).
    C3 = 256
    x3 = jax.random.normal(k_x, (1, 5, 5, C3), dtype=jnp.float32)
    g3 = 0.1 * jax.random.normal(k_g, (1, 1, 1, C3), dtype=jnp.float32)
    b3 = 0.1 * jax.random.normal(k_b, (1, 1, 1, C3), dtype=jnp.float32)
    check("two-pass/ragged", x3, g3, b3,
          single_pass_budget_bytes=0, two_pass_tile_bytes=8 * C3 * 4)

    # 5) C that neither divides nor is a multiple of 128 (masked-store fallback).
    C4 = 48
    x4 = jax.random.normal(k_x, (2, 8, 8, C4), dtype=jnp.float32)
    g4 = 0.1 * jax.random.normal(k_g, (1, 1, 1, C4), dtype=jnp.float32)
    b4 = 0.1 * jax.random.normal(k_b, (1, 1, 1, C4), dtype=jnp.float32)
    check("fused/C=48", x4, g4, b4)

    print("KERNEL_OK")
</pallas_src>

<mosaic_0001>
module attributes {stable_mosaic.version = 11 : i64} {
  func.func @grn_fused_kernel(%arg0: i32, %arg1: memref<1x64x128xf32, #tpu.memory_space<vmem>>, %arg2: memref<1x1x128xf32, #tpu.memory_space<vmem>>, %arg3: memref<1x1x128xf32, #tpu.memory_space<vmem>>, %arg4: memref<1x64x128xf32, #tpu.memory_space<vmem>>) attributes {dimension_semantics = [#tpu.dimension_semantics<parallel>], iteration_bounds = array<i64: 2>, scalar_prefetch = 0 : i64, scratch_operands = 0 : i64, tpu.core_type = #tpu.core_type<tc>, window_params = [{transform_indices = @transform_0, window_bounds = array<i64: 1, 64, 128>}, {pipeline_mode = #tpu.pipeline_mode<synchronous>, transform_indices = @transform_1, window_bounds = array<i64: 1, 1, 128>}, {pipeline_mode = #tpu.pipeline_mode<synchronous>, transform_indices = @transform_2, window_bounds = array<i64: 1, 1, 128>}, {transform_indices = @transform_3, window_bounds = array<i64: 1, 64, 128>}]} {
    %cst = arith.constant 0.000000e+00 : f32
    %0 = vector.broadcast %cst : f32 to vector<1x1x128xf32>
    %c0_i32 = arith.constant 0 : i32
    %c64_i32 = arith.constant 64 : i32
    %1 = arith.muli %c0_i32, %c64_i32 : i32
    %2 = tpu.assume_multiple %1, 8 : i32
    %c0 = arith.constant 0 : index
    %3 = arith.index_cast %2 : i32 to index
    %c0_0 = arith.constant 0 : index
    %4 = vector.load %arg1[%c0, %3, %c0_0] : memref<1x64x128xf32, #tpu.memory_space<vmem>>, vector<1x64x128xf32>
    %5 = arith.mulf %4, %4 : vector<1x64x128xf32>
    %cst_1 = arith.constant dense<0.000000e+00> : vector<1x128xf32>
    %6 = vector.multi_reduction <add>, %5, %cst_1 [1] : vector<1x64x128xf32> to vector<1x128xf32>
    %7 = vector.shape_cast %6 : vector<1x128xf32> to vector<1x1x128xf32>
    %8 = arith.addf %0, %7 : vector<1x1x128xf32>
    %c1_i32 = arith.constant 1 : i32
    %c0_2 = arith.constant 0 : index
    %c0_3 = arith.constant 0 : index
    %c0_4 = arith.constant 0 : index
    %9 = vector.load %arg2[%c0_2, %c0_3, %c0_4] : memref<1x1x128xf32, #tpu.memory_space<vmem>>, vector<1x1x128xf32>
    %c32_i32 = arith.constant 32 : i32
    %10 = tpu.dynamic_rotate %8 by %c32_i32 dim 2 : vector<1x1x128xf32>, i32 -> vector<1x1x128xf32>
    %11 = arith.addf %8, %10 : vector<1x1x128xf32>
    %c64_i32_5 = arith.constant 64 : i32
    %12 = tpu.dynamic_rotate %11 by %c64_i32_5 dim 2 : vector<1x1x128xf32>, i32 -> vector<1x1x128xf32>
    %13 = arith.addf %11, %12 : vector<1x1x128xf32>
    %14 = math.sqrt %13 : vector<1x1x128xf32>
    %cst_6 = arith.constant dense<0.000000e+00> : vector<1x1xf32>
    %15 = vector.multi_reduction <add>, %14, %cst_6 [2] : vector<1x1x128xf32> to vector<1x1xf32>
    %16 = vector.shape_cast %15 : vector<1x1xf32> to vector<1x1x1xf32>
    %cst_7 = arith.constant 7.812500e-03 : f32
    %17 = vector.broadcast %cst_7 : f32 to vector<1x1x1xf32>
    %18 = arith.mulf %16, %17 : vector<1x1x1xf32>
    %cst_8 = arith.constant 9.99999997E-7 : f32
    %19 = vector.broadcast %cst_8 : f32 to vector<1x1x1xf32>
    %20 = arith.addf %18, %19 : vector<1x1x1xf32>
    %21 = vector.broadcast %20 : vector<1x1x1xf32> to vector<1x1x128xf32>
    %22 = arith.divf %14, %21 : vector<1x1x128xf32>
    %23 = arith.mulf %9, %22 : vector<1x1x128xf32>
    %cst_9 = arith.constant 1.000000e+00 : f32
    %24 = vector.broadcast %cst_9 : f32 to vector<1x1x128xf32>
    %25 = arith.addf %24, %23 : vector<1x1x128xf32>
    %c0_10 = arith.constant 0 : index
    %c0_11 = arith.constant 0 : index
    %c0_12 = arith.constant 0 : index
    %26 = vector.load %arg3[%c0_10, %c0_11, %c0_12] : memref<1x1x128xf32, #tpu.memory_space<vmem>>, vector<1x1x128xf32>
    %c0_i32_13 = arith.constant 0 : i32
    %c64_i32_14 = arith.constant 64 : i32
    %27 = arith.muli %c0_i32_13, %c64_i32_14 : i32
    %28 = tpu.assume_multiple %27, 8 : i32
    %c0_15 = arith.constant 0 : index
    %29 = arith.index_cast %28 : i32 to index
    %c0_16 = arith.constant 0 : index
    %30 = vector.load %arg1[%c0_15, %29, %c0_16] : memref<1x64x128xf32, #tpu.memory_space<vmem>>, vector<1x64x128xf32>
    %31 = vector.broadcast %25 : vector<1x1x128xf32> to vector<1x64x128xf32>
    %32 = arith.mulf %30, %31 : vector<1x64x128xf32>
    %33 = vector.broadcast %26 : vector<1x1x128xf32> to vector<1x64x128xf32>
    %34 = arith.addf %32, %33 : vector<1x64x128xf32>
    %c0_17 = arith.constant 0 : index
    %35 = arith.index_cast %28 : i32 to index
    %c0_18 = arith.constant 0 : index
    %36 = vector.load %arg4[%c0_17, %35, %c0_18] : memref<1x64x128xf32, #tpu.memory_space<vmem>>, vector<1x64x128xf32>
    tpu.vector_store %arg4[%c0_17, %35, %c0_18], %34 {strides = array<i32>} : memref<1x64x128xf32, #tpu.memory_space<vmem>>, vector<1x64x128xf32>,
    %c1_i32_19 = arith.constant 1 : i32
    return
  }
  func.func @transform_0(%arg0: i32) -> (i32, i32, i32) {
    %c0_i32 = arith.constant 0 : i32
    %c0_i32_0 = arith.constant 0 : i32
    %c0_i32_1 = arith.constant 0 : i32
    return %arg0, %c0_i32, %c0_i32_0 : i32, i32, i32
  }
  func.func @transform_1(%arg0: i32) -> (i32, i32, i32) {
    %c0_i32 = arith.constant 0 : i32
    %c0_i32_0 = arith.constant 0 : i32
    %c0_i32_1 = arith.constant 0 : i32
    %c0_i32_2 = arith.constant 0 : i32
    return %c0_i32, %c0_i32_0, %c0_i32_1 : i32, i32, i32
  }
  func.func @transform_2(%arg0: i32) -> (i32, i32, i32) {
    %c0_i32 = arith.constant 0 : i32
    %c0_i32_0 = arith.constant 0 : i32
    %c0_i32_1 = arith.constant 0 : i32
    %c0_i32_2 = arith.constant 0 : i32
    return %c0_i32, %c0_i32_0, %c0_i32_1 : i32, i32, i32
  }
  func.func @transform_3(%arg0: i32) -> (i32, i32, i32) {
    %c0_i32 = arith.constant 0 : i32
    %c0_i32_0 = arith.constant 0 : i32
    %c0_i32_1 = arith.constant 0 : i32
    return %arg0, %c0_i32, %c0_i32_0 : i32, i32, i32
  }
}

</mosaic_0001>

<llo_original>
// kernel: tpu_custom_call.1
$region0: #{tpu_custom_call.1}
  #allocation0 [shape = 'u32[]', space=smem, size = 0x4, offset = 0x4, fixed_abs, tag = 'smem constant byte address 0x4 - core index']
  #allocation1 [shape = 'u32[144,128]{1,0:T(1,128)}', space=vmem, size = 0x12000, scoped, tag = 'internal scratch']
  %s0 = inlined_call_operand.hbm [shape: f32[2,64,128], index: 0, kind: input, shape index: {}]
  %s1 = inlined_call_operand.vmem [shape: f32[1,1,128], index: 1, kind: input, shape index: {}]
  %s2 = inlined_call_operand.vmem [shape: f32[1,1,128], index: 2, kind: input, shape index: {}]
  %s3 = inlined_call_operand.hbm [shape: f32[2,64,128], index: 3, kind: output, shape index: {}]
  %s4 = sld [smem:[#allocation0]]
  $region49: #{tpu_custom_call.1} parent=0
    _
  %s6 = ssub.s32 1, %s4
  %s7 = scalar_select 0, %s6, %s4
  $region1: #{tpu_custom_call.1} parent=0
    #allocation2 [shape = 'u8[65536]{0}', space=vmem, size = 0x10000, scoped, tag = 'input window, operand 0']
    #allocation3 [shape = 's32[2]{0}', space=sflag, size = 0x8, scoped, tag = 'scoped memory for tpu_custom_call.1']
    #allocation4 [shape = 's32[2]{0}', space=sflag, size = 0x8, scoped, tag = 'scoped memory for tpu_custom_call.1']
    #allocation5 [shape = 'u8[65536]{0}', space=vmem, size = 0x10000, scoped, tag = 'output window, operand 0']
    %8 = vsyncpa [#allocation3], 0
    %s9 = scalar_lea.sflag [#allocation3], 1
    %10 = vsyncpa %s9, 0
    %11 = vsyncpa [#allocation4], 0
    %s12 = scalar_lea.sflag [#allocation4], 1
    %13 = vsyncpa %s12, 0
    loop: start=0, step=1, limit=4
    $region2: #{tpu_custom_call.1} parent=1 // loop_pre_header
      _
    $region3: #{tpu_custom_call.1} parent=1 // loop_header
      %s15 = sphi 0, %s19
      %p16 = scmp.ge.s32.totalorder %s15, 4
      %s25 = sphi 0, %s27
      %s28 = sphi 0, %s25
      %s29 = sphi 0, %s28
      %s45 = sphi 0, %s29
      %s49 = sphi 0, %s49
      %s51 = sphi 0, %s49
      %s52 = sphi 0, %s51
      %s66 = sphi 0, %s52
      %s70 = sphi 0, %s70
      %s72 = sphi 0, %s70
      %s73 = sphi 0, %s72
      %s87 = sphi 0, %s73
      %s93 = sphi 0, %s95
      %s96 = sphi 0, %s93
      %s97 = sphi 0, %s96
      %s113 = sphi 0, %s97
    $region4: #{tpu_custom_call.1} parent=1 // loop_header_branch
      %18 = sbr.rel (%p16) target = $region8
    $region5: #{tpu_custom_call.1} parent=1 // loop_body
      %s20 = ssub.s32 %s15, 1
      %s21 = ssub.s32 %s15, 2
      %s22 = sadd.s32 %s15, 1
      %s23 = ssub.s32 %s15, %s22
      %p24 = scmp.eq.s32.totalorder %s23, 0
      %s26 = sadd.s32 %s25, 1
      %s27 = scalar_select %p24, %s25, %s26
      %p30 = pneg %p24
      %p31 = scmp.eq.s32.totalorder %s15, 1
      %p32 = por %p30, %p31
      %p33 = scmp.ne.s32.totalorder %s25, %s28
      %p34 = scmp.eq.s32.totalorder %s15, 0
      %p35 = por %p33, %p34
      %p36 = scmp.ne.s32.totalorder %s25, %s28
      %p37 = scmp.eq.s32.totalorder %s20, 1
      %p38 = por %p36, %p37
      %p39 = scmp.ne.s32.totalorder %s28, %s29
      %p40 = scmp.eq.s32.totalorder %s20, 0
      %p41 = por %p39, %p40
      %p42 = scmp.ne.s32.totalorder %s28, %s29
      %p43 = scmp.eq.s32.totalorder %s21, 1
      %p44 = por %p42, %p43
      %p46 = scmp.ne.s32.totalorder %s29, %s45
      %p47 = scmp.eq.s32.totalorder %s21, 0
      %p48 = por %p46, %p47
      %s50 = sadd.s32 %s49, 1
      %p53 = scmp.eq.s32.totalorder %s15, 1
      %p54 = scmp.ne.s32.totalorder %s49, %s51
      %p55 = scmp.eq.s32.totalorder %s15, 0
      %p56 = por %p54, %p55
      %p57 = scmp.ne.s32.totalorder %s49, %s51
      %p58 = scmp.eq.s32.totalorder %s20, 1
      %p59 = por %p57, %p58
      %p60 = scmp.ne.s32.totalorder %s51, %s52
      %p61 = scmp.eq.s32.totalorder %s20, 0
      %p62 = por %p60, %p61
      %p63 = scmp.ne.s32.totalorder %s51, %s52
      %p64 = scmp.eq.s32.totalorder %s21, 1
      %p65 = por %p63, %p64
      %p67 = scmp.ne.s32.totalorder %s52, %s66
      %p68 = scmp.eq.s32.totalorder %s21, 0
      %p69 = por %p67, %p68
      %s71 = sadd.s32 %s70, 1
      %p74 = scmp.eq.s32.totalorder %s15, 1
      %p75 = scmp.ne.s32.totalorder %s70, %s72
      %p76 = scmp.eq.s32.totalorder %s15, 0
      %p77 = por %p75, %p76
      %p78 = scmp.ne.s32.totalorder %s70, %s72
      %p79 = scmp.eq.s32.totalorder %s20, 1
      %p80 = por %p78, %p79
      %p81 = scmp.ne.s32.totalorder %s72, %s73
      %p82 = scmp.eq.s32.totalorder %s20, 0
      %p83 = por %p81, %p82
      %p84 = scmp.ne.s32.totalorder %s72, %s73
      %p85 = scmp.eq.s32.totalorder %s21, 1
      %p86 = por %p84, %p85
      %p88 = scmp.ne.s32.totalorder %s73, %s87
      %p89 = scmp.eq.s32.totalorder %s21, 0
      %p90 = por %p88, %p89
      %s91 = ssub.s32 %s15, %s22
      %p92 = scmp.eq.s32.totalorder %s91, 0
      %s94 = sadd.s32 %s93, 1
      %s95 = scalar_select %p92, %s93, %s94
      %p98 = pneg %p92
      %p99 = scmp.eq.s32.totalorder %s15, 1
      %p100 = por %p98, %p99
      %p101 = scmp.ne.s32.totalorder %s93, %s96
      %p102 = scmp.eq.s32.totalorder %s15, 0
      %p103 = por %p101, %p102
      %p104 = scmp.ne.s32.totalorder %s93, %s96
      %p105 = scmp.eq.s32.totalorder %s20, 1
      %p106 = por %p104, %p105
      %p107 = scmp.ne.s32.totalorder %s96, %s97
      %p108 = scmp.eq.s32.totalorder %s20, 0
      %p109 = por %p107, %p108
      %p110 = scmp.ne.s32.totalorder %s96, %s97
      %p111 = scmp.eq.s32.totalorder %s21, 1
      %p112 = por %p110, %p111
      %p114 = scmp.ne.s32.totalorder %s97, %s113
      %p115 = scmp.eq.s32.totalorder %s21, 0
      %p116 = por %p114, %p115
      %p117 = scmp.le.s32.totalorder 1, %s15
      %p118 = scmp.lt.s32.totalorder %s15, 3
      %p119 = pnand %p117, %p118
      %p120 = pneg %p119
      // Predicated region
      $region9: #{tpu_custom_call.1} parent=5 // pred_check
        _
      $region10: #{tpu_custom_call.1} parent=5 // pred_check_branch
        %122 = sbr.rel (%p119) target = $region12
      $region11: #{tpu_custom_call.1} parent=5 // pred_region
        %s123 = ssub.s32 %s15, 1
        // Predicated region
        $region13: #{tpu_custom_call.1} parent=11 // pred_check
          %p124 = pneg %p62
        $region14: #{tpu_custom_call.1} parent=11 // pred_check_branch
          %126 = sbr.rel (%p124) target = $region16
        $region15: #{tpu_custom_call.1} parent=11 // pred_region
          _
        $region16: #{tpu_custom_call.1} parent=11 // pred_fallthru
          _
        // Predicated region
        $region17: #{tpu_custom_call.1} parent=11 // pred_check
          %p127 = pneg %p83
        $region18: #{tpu_custom_call.1} parent=11 // pred_check_branch
          %129 = sbr.rel (%p127) target = $region20
        $region19: #{tpu_custom_call.1} parent=11 // pred_region
          _
        $region20: #{tpu_custom_call.1} parent=11 // pred_fallthru
          _
      $region12: #{tpu_custom_call.1} parent=5 // pred_fallthru
        _
      %p130 = scmp.lt.s32.totalorder %s15, 2
      // Predicated region
      $region21: #{tpu_custom_call.1} parent=5 // pred_check
        %p131 = pneg %p130
      $region22: #{tpu_custom_call.1} parent=5 // pred_check_branch
        %133 = sbr.rel (%p131) target = $region24
      $region23: #{tpu_custom_call.1} parent=5 // pred_region
        // Predicated region
        $region25: #{tpu_custom_call.1} parent=23 // pred_check
          %p134 = pneg %p35
        $region26: #{tpu_custom_call.1} parent=23 // pred_check_branch
          %136 = sbr.rel (%p134) target = $region28
        $region27: #{tpu_custom_call.1} parent=23 // pred_region
          %s137 = sand.u32 %s25, 1
          %s138 = scalar_lea.sflag [#allocation3], %s137
          %s139 = sand.u32 %s25, 1
          %s140 = smul.addr %s139, 64
          %s141 = scalar_lea.vmem [#allocation2], %s140
          %s143 = ssub.s32 1024, 1024
          %144 = vsyncadd %s138, %s143
          %s145 = smul.addr %s15, 8
          %s146 = smul.addr %s145, 128
          %s147 = scalar_lea.hbm %s0, %s146
          %s148 = sshll.u32 %s141, 4
          %s149 = int_to_ptr.vmem [resolvable:$true] %s148
          %154 = dma.hbm_to_vmem [thread:$0]  %s147, 1024, %s149, %s138, 128, 128, 8
        $region28: #{tpu_custom_call.1} parent=23 // pred_fallthru
          _
      $region24: #{tpu_custom_call.1} parent=5 // pred_fallthru
        _
      %p155 = scmp.le.s32.totalorder 1, %s15
      %p156 = scmp.lt.s32.totalorder %s15, 3
      %p157 = pnand %p155, %p156
      %p158 = pneg %p157
      // Predicated region
      $region29: #{tpu_custom_call.1} parent=5 // pred_check
        _
      $region30: #{tpu_custom_call.1} parent=5 // pred_check_branch
        %160 = sbr.rel (%p157) target = $region32
      $region31: #{tpu_custom_call.1} parent=5 // pred_region
        %s161 = ssub.s32 %s15, 1
        %s162 = sand.u32 %s28, 1
        %s163 = scalar_lea.sflag [#allocation3], %s162
        %s164 = sand.u32 %s28, 1
        %s165 = smul.addr %s164, 64
        %s166 = scalar_lea.vmem [#allocation2], %s165
        // Predicated region
        $region33: #{tpu_custom_call.1} parent=31 // pred_check
          %p167 = pneg %p41
        $region34: #{tpu_custom_call.1} parent=31 // pred_check_branch
          %169 = sbr.rel (%p167) target = $region36
        $region35: #{tpu_custom_call.1} parent=31 // pred_region
          %170 = dma.done %s163, 1024
        $region36: #{tpu_custom_call.1} parent=31 // pred_fallthru
          _
        %s171 = sand.u32 %s28, 1
        %s172 = scalar_lea.sflag [#allocation3], %s171
        %s173 = sand.u32 %s28, 1
        %s174 = smul.addr %s173, 64
        %s175 = scalar_lea.vmem [#allocation2], %s174
        %p176 = pneg %p41
        %p177 = pneg %p38
        %p178 = pneg %p62
        %p179 = pneg %p59
        %p180 = pneg %p83
        %p181 = pneg %p80
        %p182 = pneg %p109
        %p183 = pneg %p106
        %s184 = sand.u32 %s96, 1
        %s185 = scalar_lea.sflag [#allocation4], %s184
        %s186 = sand.u32 %s96, 1
        %s187 = smul.addr %s186, 64
        %s188 = scalar_lea.vmem [#allocation5], %s187
        %v189 = vld [vmem:[%s166] sm:$0xff]
        %v190 = vld [vmem:[%s166 + $0x8] sm:$0xff]
        %v191 = vld [vmem:[%s166 + $0x10] sm:$0xff]
        %v192 = vld [vmem:[%s166 + $0x18] sm:$0xff]
        %v193 = vld [vmem:[%s166 + $0x20] sm:$0xff]
        %v194 = vld [vmem:[%s166 + $0x28] sm:$0xff]
        %v195 = vld [vmem:[%s166 + $0x30] sm:$0xff]
        %v196 = vld [vmem:[%s166 + $0x38] sm:$0xff]
        %v197 = vmul.f32 %v189, %v189
        %v198 = vmul.f32 %v190, %v190
        %v199 = vmul.f32 %v191, %v191
        %v200 = vmul.f32 %v192, %v192
        %v201 = vmul.f32 %v193, %v193
        %v202 = vmul.f32 %v194, %v194
        %v203 = vmul.f32 %v195, %v195
        %v204 = vmul.f32 %v196, %v196
        %v205 = vadd.f32 %v197, %v198
        %v206 = vadd.f32 %v205, %v199
        %v207 = vadd.f32 %v206, %v200
        %v208 = vadd.f32 %v207, %v201
        %v209 = vadd.f32 %v208, %v202
        %v210 = vadd.f32 %v209, %v203
        %v211 = vadd.f32 %v210, %v204
        %v212 = vrot.slane %v211, 4
        %v213 = vadd.f32 %v211, %v212
        %v214 = vrot.slane %v213, 2
        %v215 = vadd.f32 %v213, %v214
        %v216 = vrot.slane %v215, 1
        %v217 = vadd.f32 %v215, %v216
        %v218 = vadd.f32 %v217, 0.0
        %v219 = vld [vmem:[%s1] sm:$0x1]
        %220 = vrot.lane.b32.xlu0 %v218, 32
        %v221 = vpop.permute.xlu0 %220
        %v222 = vadd.f32 %v218, %v221
        %223 = vrot.lane.b32.xlu0 %v222, 64
        %v224 = vpop.permute.xlu0 %223
        %v225 = vadd.f32 %v222, %v224
        %v226 = vrsqrt.pop %v225
        %v227 = vmul.f32 %v225, %v226
        %vm228 = vcmp.eq.f32.partialorder %v225, inf
        %v229 = vsel %vm228, %v225, %v227
        %vm230 = vcmp.eq.f32.partialorder %v225, 0.0
        %v231 = vand.u32 %v225, 2147483648
        %v232 = vsel %vm230, %v231, %v229
        %vm233 = vcmask 1040384
        %v234 = vsel %vm233, %v232, 0.0
        %235 = vadd.xlane.f32.xlu0 %v234
        %v236 = vpop.xlane.xlu0 %235
        %v237 = vmul.f32 %v236, 0.0078125
        %v238 = vadd.f32 %v237, 1e-06
        %v239 = vrcp.pop %v238
        %v240 = vmul.f32 %v232, %v239
        %v241 = vmul.f32 %v219, %v240
        %v242 = vadd.f32 %v241, 1.0
        %v243 = vld [vmem:[%s2] sm:$0x1]
        %v245 = vlaneseq
        %v246 = vshrl.u32 %v245, 7
        %v247 = vsub.s32 0, %v246
        %v248 = vrot.slane %v242, %v247
        %v250 = vmul.f32 %v189, %v248
        %v251 = vmul.f32 %v190, %v248
        %v252 = vmul.f32 %v191, %v248
        %v253 = vmul.f32 %v192, %v248
        %v254 = vmul.f32 %v193, %v248
        %v255 = vmul.f32 %v194, %v248
        %v256 = vmul.f32 %v195, %v248
        %v257 = vmul.f32 %v196, %v248
        %v259 = vlaneseq
        %v260 = vshrl.u32 %v259, 7
        %v261 = vsub.s32 0, %v260
        %v262 = vrot.slane %v243, %v261
        %v264 = vadd.f32 %v250, %v262
        %v265 = vadd.f32 %v251, %v262
        %v266 = vadd.f32 %v252, %v262
        %v267 = vadd.f32 %v253, %v262
        %v268 = vadd.f32 %v254, %v262
        %v269 = vadd.f32 %v255, %v262
        %v270 = vadd.f32 %v256, %v262
        %v271 = vadd.f32 %v257, %v262
        %272 = vst [vmem:[%s188] sm:$0xff] %v264
        %273 = vst [vmem:[%s188 + $0x8] sm:$0xff] %v265
        %274 = vst [vmem:[%s188 + $0x10] sm:$0xff] %v266
        %275 = vst [vmem:[%s188 + $0x18] sm:$0xff] %v267
        %276 = vst [vmem:[%s188 + $0x20] sm:$0xff] %v268
        %277 = vst [vmem:[%s188 + $0x28] sm:$0xff] %v269
        %278 = vst [vmem:[%s188 + $0x30] sm:$0xff] %v270
        %279 = vst [vmem:[%s188 + $0x38] sm:$0xff] %v271
        %s280 = sand.u32 %s96, 1
        %s281 = scalar_lea.sflag [#allocation4], %s280
        %s282 = sand.u32 %s96, 1
        %s283 = smul.addr %s282, 64
        %s284 = scalar_lea.vmem [#allocation5], %s283
        // Predicated region
        $region37: #{tpu_custom_call.1} parent=31 // pred_check
          %p285 = pneg %p106
        $region38: #{tpu_custom_call.1} parent=31 // pred_check_branch
          %287 = sbr.rel (%p285) target = $region40
        $region39: #{tpu_custom_call.1} parent=31 // pred_region
          %s289 = ssub.s32 1024, 1024
          %290 = vsyncadd %s281, %s289
          %s291 = smul.addr %s20, 8
          %s292 = smul.addr %s291, 128
          %s293 = scalar_lea.hbm %s3, %s292
          %s294 = sshll.u32 %s284, 4
          %s295 = int_to_ptr.vmem [resolvable:$true] %s294
          %300 = dma.vmem_to_hbm [thread:$0]  %s295, 1024, %s293, %s281, 128, 128, 8
        $region40: #{tpu_custom_call.1} parent=31 // pred_fallthru
          _
      $region32: #{tpu_custom_call.1} parent=5 // pred_fallthru
        _
      %p301 = scmp.le.s32.totalorder 2, %s15
      // Predicated region
      $region41: #{tpu_custom_call.1} parent=5 // pred_check
        %p302 = pneg %p301
      $region42: #{tpu_custom_call.1} parent=5 // pred_check_branch
        %304 = sbr.rel (%p302) target = $region44
      $region43: #{tpu_custom_call.1} parent=5 // pred_region
        %s305 = ssub.s32 %s15, 2
        // Predicated region
        $region45: #{tpu_custom_call.1} parent=43 // pred_check
          %p306 = pneg %p112
        $region46: #{tpu_custom_call.1} parent=43 // pred_check_branch
          %308 = sbr.rel (%p306) target = $region48
        $region47: #{tpu_custom_call.1} parent=43 // pred_region
          %s309 = sand.u32 %s97, 1
          %s310 = scalar_lea.sflag [#allocation4], %s309
          %s311 = sand.u32 %s97, 1
          %s312 = smul.addr %s311, 64
          %s313 = scalar_lea.vmem [#allocation5], %s312
          %314 = dma.done %s310, 1024
        $region48: #{tpu_custom_call.1} parent=43 // pred_fallthru
          _
      $region44: #{tpu_custom_call.1} parent=5 // pred_fallthru
        _
    $region6: #{tpu_custom_call.1} parent=1 // loop_footer
      %s19 = sadd.s32 1, %s15
    $region7: #{tpu_custom_call.1} parent=1 // loop_footer_branch
      %14 = sbr.rel target = $region3
    $region8: #{tpu_custom_call.1} parent=1 // loop_exit
      _
    %315 = vsyncpa [#allocation3], 1
    %s316 = scalar_lea.sflag [#allocation3], 1
    %317 = vsyncpa %s316, 1
    %318 = vsyncpa [#allocation4], 1
    %s319 = scalar_lea.sflag [#allocation4], 1
    %320 = vsyncpa %s319, 1

</llo_original>
